<compile_context>
chip_gen: v7x
topology: tpu7x:2x2x1
jax: 0.10.0
libtpu: 0.0.40
codegen_flags: <defaults>
</compile_context>

<pallas_src>
import functools

import jax
import jax.numpy as jnp
from jax.experimental import pallas as pl
from jax.experimental.pallas import tpu as pltpu

EPS = 1e-5  # PyTorch BatchNorm1d default eps


def _cdiv(a, b):
    return (a + b - 1) // b


def _round_up(a, b):
    return _cdiv(a, b) * b


# ---------------------------------------------------------------------------
# Pass 1: y = x @ W (bf16 MXU, f32 acc); per-feature sum / sum-of-squares.
# Grid: (split, n_tiles, m_tiles_per_split, k_tiles).  Each (split, n_tile)
# owns a resident (1, 2, tn) stats block: row 0 = sum, row 1 = sum-of-squares.
# ---------------------------------------------------------------------------
def _stats_kernel(x_ref, w_ref, stats_ref, acc_ref, *, n_rows, tm,
                  m_tiles_per_split, mask_rows):
    c = pl.program_id(0)
    i = pl.program_id(2)
    k = pl.program_id(3)
    nk = pl.num_programs(3)

    @pl.when(jnp.logical_and(i == 0, k == 0))
    def _():
        stats_ref[...] = jnp.zeros_like(stats_ref)

    @pl.when(k == 0)
    def _():
        acc_ref[...] = jnp.zeros_like(acc_ref)

    acc_ref[...] += jnp.dot(x_ref[...].astype(jnp.bfloat16), w_ref[...],
                            preferred_element_type=jnp.float32)

    @pl.when(k == nk - 1)
    def _():
        y = acc_ref[...]
        if mask_rows:
            # Zero rows past the true batch size (ragged last tile and/or
            # duplicated clamped tiles from the core split).
            row0 = (c * m_tiles_per_split + i) * tm
            rows = row0 + jax.lax.broadcasted_iota(jnp.int32, y.shape, 0)
            y = jnp.where(rows < n_rows, y, 0.0)
        s = jnp.sum(y, axis=0, keepdims=True)
        q = jnp.sum(y * y, axis=0, keepdims=True)
        stats_ref[...] += jnp.concatenate([s, q], axis=0)[None]


# ---------------------------------------------------------------------------
# Pass 2: recompute y (tiled bf16 matmul, f32 acc) + fused scale/shift + ReLU.
# ---------------------------------------------------------------------------
def _matmul_bn_relu_kernel(x_ref, w_ref, ss_ref, o_ref, acc_ref):
    k = pl.program_id(2)
    nk = pl.num_programs(2)

    @pl.when(k == 0)
    def _():
        acc_ref[...] = jnp.zeros_like(acc_ref)

    acc_ref[...] += jnp.dot(x_ref[...].astype(jnp.bfloat16), w_ref[...],
                            preferred_element_type=jnp.float32)

    @pl.when(k == nk - 1)
    def _():
        scale = ss_ref[0:1, :]
        shift = ss_ref[1:2, :]
        o_ref[...] = jnp.maximum(acc_ref[...] * scale + shift,
                                 0.0).astype(o_ref.dtype)


# ---------------------------------------------------------------------------
# Wrapper
# ---------------------------------------------------------------------------
def fc_bn_relu(x, w, b, gamma, beta, *, tm=512, tn=512, tk=512,
               vmem_limit_bytes=48 * 1024 * 1024):
    """F.relu(BatchNorm1d(Linear(x))) with training-mode batch statistics.

    x: (M, C_in) f32; w: (C_in, C_out); b: (C_out,); gamma/beta: (C_out,).
    Returns (M, C_out) f32.
    """
    # Linear bias is a per-feature constant -> cancelled exactly by the BN mean
    # subtraction, so it is dead work for the forward output and folded away.
    del b

    m, kdim = x.shape
    n = w.shape[1]

    x = x.astype(jnp.float32)            # stays f32; cast to bf16 in-kernel
    w_bf = w.astype(jnp.bfloat16)        # precast once (re-read many times)

    # Clamp tiles so block shapes are either full-dim or (8,128)-aligned.
    tm = min(tm, m)
    tn = min(tn, n)
    tk = min(tk, kdim)

    # Zero-pad the contraction dim only if K > tk and ragged, so OOB garbage
    # never reaches the MXU.
    k_pad = _round_up(kdim, tk)
    if k_pad != kdim:
        x = jnp.pad(x, ((0, 0), (0, k_pad - kdim)))
        w_bf = jnp.pad(w_bf, ((0, k_pad - kdim), (0, 0)))

    grid_m = _cdiv(m, tm)
    grid_n = _cdiv(n, tn)
    grid_k = k_pad // tk

    # Split the stats pass across 2 "virtual cores" (v7x megacore) when there
    # is more than one row tile; harmless (serial) on single-TC chips.
    n_split = 2 if grid_m > 1 else 1
    m_tiles_per_split = _cdiv(grid_m, n_split)
    mask_rows = (n_split * m_tiles_per_split * tm != m)

    flops = 2 * m * k_pad * n

    # ---------------- pass 1: per-feature sum / sum-of-squares ---------------
    stats = pl.pallas_call(
        functools.partial(_stats_kernel, n_rows=m, tm=tm,
                          m_tiles_per_split=m_tiles_per_split,
                          mask_rows=mask_rows),
        out_shape=jax.ShapeDtypeStruct((n_split, 2, n), jnp.float32),
        grid=(n_split, grid_n, m_tiles_per_split, grid_k),
        in_specs=[
            pl.BlockSpec(
                (tm, tk),
                lambda c, j, i, k: (
                    jnp.minimum(c * m_tiles_per_split + i, grid_m - 1), k)),
            pl.BlockSpec((tk, tn), lambda c, j, i, k: (k, j)),
        ],
        out_specs=pl.BlockSpec((1, 2, tn), lambda c, j, i, k: (c, 0, j)),
        scratch_shapes=[pltpu.VMEM((tm, tn), jnp.float32)],
        compiler_params=pltpu.CompilerParams(
            dimension_semantics=("parallel", "parallel", "arbitrary",
                                 "arbitrary"),
            vmem_limit_bytes=vmem_limit_bytes),
        cost_estimate=pl.CostEstimate(
            flops=int(flops), transcendentals=0,
            bytes_accessed=int(x.size * 4 * grid_n + w_bf.size * 2 * grid_m
                               + 2 * n_split * n * 4)),
    )(x, w_bf)

    # ------ tiny O(N) epilogue: fold batch stats into scale/shift ------------
    col_sum = jnp.sum(stats[:, 0, :], axis=0)
    col_ssq = jnp.sum(stats[:, 1, :], axis=0)
    inv_m = 1.0 / m
    mean = col_sum * inv_m
    # Biased variance (PyTorch BN normalizes with 1/M).  Computed in f32; clamp
    # guards small negative values from E[y^2]-E[y]^2 cancellation.
    var = jnp.maximum(col_ssq * inv_m - mean * mean, 0.0)
    scale = gamma.astype(jnp.float32) * jax.lax.rsqrt(var + EPS)
    shift = beta.astype(jnp.float32) - mean * scale
    ss = jnp.stack([scale, shift], axis=0)  # (2, N): single packed operand

    # ---------------- pass 2: matmul recompute + normalize + ReLU -------------
    out = pl.pallas_call(
        _matmul_bn_relu_kernel,
        out_shape=jax.ShapeDtypeStruct((m, n), jnp.float32),
        grid=(grid_m, grid_n, grid_k),
        in_specs=[
            pl.BlockSpec((tm, tk), lambda i, j, k: (i, k)),
            pl.BlockSpec((tk, tn), lambda i, j, k: (k, j)),
            pl.BlockSpec((2, tn), lambda i, j, k: (0, j)),
        ],
        out_specs=pl.BlockSpec((tm, tn), lambda i, j, k: (i, j)),
        scratch_shapes=[pltpu.VMEM((tm, tn), jnp.float32)],
        compiler_params=pltpu.CompilerParams(
            dimension_semantics=("parallel", "parallel", "arbitrary"),
            vmem_limit_bytes=vmem_limit_bytes),
        cost_estimate=pl.CostEstimate(
            flops=int(flops), transcendentals=0,
            bytes_accessed=int(x.size * 4 * grid_n + w_bf.size * 2 * grid_m
                               + m * n * 4)),
    )(x, w_bf, ss)

    return out


# ---------------------------------------------------------------------------
# Pure-JAX reference (mirrors the PyTorch module forward, f32)
# ---------------------------------------------------------------------------
def fc_bn_relu_reference(x, w, b, gamma, beta):
    y = x @ w + b
    mean = jnp.mean(y, axis=0, keepdims=True)
    var = jnp.mean((y - mean) ** 2, axis=0, keepdims=True)
    y_hat = (y - mean) * jax.lax.rsqrt(var + EPS)
    return jnp.maximum(y_hat * gamma + beta, 0.0)


if __name__ == "__main__":
    key = jax.random.PRNGKey(0)

    # --- main check: small, tile-aligned shapes --------------------------------
    batch, in_features, out_features = 16, 32, 64
    kx, kw, kb, kg, kbe = jax.random.split(key, 5)
    x = jax.random.normal(kx, (batch, in_features), jnp.float32)
    w = jax.random.normal(kw, (in_features, out_features), jnp.float32) * 0.05
    b = jax.random.normal(kb, (out_features,), jnp.float32) * 0.01
    gamma = 1.0 + 0.1 * jax.random.normal(kg, (out_features,), jnp.float32)
    beta = 0.1 * jax.random.normal(kbe, (out_features,), jnp.float32)

    out = fc_bn_relu(x, w, b, gamma, beta)
    jax.block_until_ready(out)
    assert out.shape == (batch, out_features)
    ref = fc_bn_relu_reference(x, w, b, gamma, beta)
    # bf16 matmul vs f32 reference -> loose tolerance
    assert jnp.allclose(out, ref, atol=5e-2, rtol=5e-2), float(
        jnp.max(jnp.abs(out - ref)))

    # --- second check: ragged batch + multi row-tile (exercises the core split,
    # the index clamp, the in-kernel row mask and dropped OOB writes) -----------
    m2, k2, n2 = 37, 32, 64
    kx2, kw2, kb2, kg2, kbe2 = jax.random.split(jax.random.PRNGKey(1), 5)
    x2 = jax.random.normal(kx2, (m2, k2), jnp.float32)
    w2 = jax.random.normal(kw2, (k2, n2), jnp.float32) * 0.05
    b2 = jax.random.normal(kb2, (n2,), jnp.float32) * 0.01
    g2 = 1.0 + 0.1 * jax.random.normal(kg2, (n2,), jnp.float32)
    be2 = 0.1 * jax.random.normal(kbe2, (n2,), jnp.float32)

    out2 = fc_bn_relu(x2, w2, b2, g2, be2, tm=16)
    jax.block_until_ready(out2)
    assert out2.shape == (m2, n2)
    ref2 = fc_bn_relu_reference(x2, w2, b2, g2, be2)
    assert jnp.allclose(out2, ref2, atol=5e-2, rtol=5e-2), float(
        jnp.max(jnp.abs(out2 - ref2)))

    print("KERNEL_OK")
</pallas_src>

<mosaic_0001>
module attributes {stable_mosaic.version = 11 : i64} {
  func.func @_stats_kernel(%arg0: i32, %arg1: i32, %arg2: i32, %arg3: i32, %arg4: memref<16x32xf32, #tpu.memory_space<vmem>>, %arg5: memref<32x64xbf16, #tpu.memory_space<vmem>>, %arg6: memref<1x2x64xf32, #tpu.memory_space<vmem>>, %arg7: memref<16x64xf32, #tpu.memory_space<vmem>>) attributes {dimension_semantics = [#tpu.dimension_semantics<parallel>, #tpu.dimension_semantics<parallel>, #tpu.dimension_semantics<arbitrary>, #tpu.dimension_semantics<arbitrary>], iteration_bounds = array<i64: 1, 1, 1, 1>, scalar_prefetch = 0 : i64, scratch_operands = 1 : i64, tpu.core_type = #tpu.core_type<tc>, window_params = [{transform_indices = @transform_0, window_bounds = array<i64: 16, 32>}, {transform_indices = @transform_1, window_bounds = array<i64: 32, 64>}, {transform_indices = @transform_2, window_bounds = array<i64: 1, 2, 64>}]} {
    %c0_i32 = arith.constant 0 : i32
    %0 = arith.cmpi eq, %arg2, %c0_i32 : i32
    %c0_i32_0 = arith.constant 0 : i32
    %1 = arith.cmpi eq, %arg3, %c0_i32_0 : i32
    %2 = arith.andi %0, %1 : i1
    %3 = arith.extui %2 : i1 to i32
    %c0_i32_1 = arith.constant 0 : i32
    %4 = arith.cmpi ne, %3, %c0_i32_1 : i32
    scf.if %4 {
      %cst_13 = arith.constant 0.000000e+00 : f32
      %18 = vector.broadcast %cst_13 : f32 to vector<1x2x64xf32>
      %c0_14 = arith.constant 0 : index
      %c0_15 = arith.constant 0 : index
      %c0_16 = arith.constant 0 : index
      %19 = vector.load %arg6[%c0_14, %c0_15, %c0_16] : memref<1x2x64xf32, #tpu.memory_space<vmem>>, vector<1x2x64xf32>
      tpu.vector_store %arg6[%c0_14, %c0_15, %c0_16], %18 {strides = array<i32>} : memref<1x2x64xf32, #tpu.memory_space<vmem>>, vector<1x2x64xf32>,
    } else {
    }
    %c0_i32_2 = arith.constant 0 : i32
    %5 = arith.cmpi eq, %arg3, %c0_i32_2 : i32
    %6 = arith.extui %5 : i1 to i32
    %c0_i32_3 = arith.constant 0 : i32
    %7 = arith.cmpi ne, %6, %c0_i32_3 : i32
    scf.if %7 {
      %cst_13 = arith.constant 0.000000e+00 : f32
      %18 = vector.broadcast %cst_13 : f32 to vector<16x64xf32>
      %c0_14 = arith.constant 0 : index
      %c0_15 = arith.constant 0 : index
      %19 = vector.load %arg7[%c0_14, %c0_15] : memref<16x64xf32, #tpu.memory_space<vmem>>, vector<16x64xf32>
      tpu.vector_store %arg7[%c0_14, %c0_15], %18 {strides = array<i32>} : memref<16x64xf32, #tpu.memory_space<vmem>>, vector<16x64xf32>,
    } else {
    }
    %c0 = arith.constant 0 : index
    %c0_4 = arith.constant 0 : index
    %8 = vector.load %arg7[%c0, %c0_4] : memref<16x64xf32, #tpu.memory_space<vmem>>, vector<16x64xf32>
    %c0_5 = arith.constant 0 : index
    %c0_6 = arith.constant 0 : index
    %9 = vector.load %arg4[%c0_5, %c0_6] : memref<16x32xf32, #tpu.memory_space<vmem>>, vector<16x32xf32>
    %10 = arith.truncf %9 : vector<16x32xf32> to vector<16x32xbf16>
    %c0_7 = arith.constant 0 : index
    %c0_8 = arith.constant 0 : index
    %11 = vector.load %arg5[%c0_7, %c0_8] : memref<32x64xbf16, #tpu.memory_space<vmem>>, vector<32x64xbf16>
    %cst = arith.constant dense<0.000000e+00> : vector<16x64xf32>
    %12 = tpu.matmul %10, %11, %cst {dimension_numbers = #tpu.dot_dimension_numbers<[1], [0], [0], [1], [0, 0, 1, 1], [], []>} : vector<16x32xbf16>, vector<32x64xbf16>, vector<16x64xf32> -> vector<16x64xf32>
    %13 = arith.addf %8, %12 : vector<16x64xf32>
    %c0_9 = arith.constant 0 : index
    %c0_10 = arith.constant 0 : index
    %14 = vector.load %arg7[%c0_9, %c0_10] : memref<16x64xf32, #tpu.memory_space<vmem>>, vector<16x64xf32>
    tpu.vector_store %arg7[%c0_9, %c0_10], %13 {strides = array<i32>} : memref<16x64xf32, #tpu.memory_space<vmem>>, vector<16x64xf32>,
    %c0_i32_11 = arith.constant 0 : i32
    %15 = arith.cmpi eq, %arg3, %c0_i32_11 : i32
    %16 = arith.extui %15 : i1 to i32
    %c0_i32_12 = arith.constant 0 : i32
    %17 = arith.cmpi ne, %16, %c0_i32_12 : i32
    scf.if %17 {
      %c0_13 = arith.constant 0 : index
      %c0_14 = arith.constant 0 : index
      %18 = vector.load %arg7[%c0_13, %c0_14] : memref<16x64xf32, #tpu.memory_space<vmem>>, vector<16x64xf32>
      %cst_15 = arith.constant dense<0.000000e+00> : vector<64xf32>
      %19 = vector.multi_reduction <add>, %18, %cst_15 [0] : vector<16x64xf32> to vector<64xf32>
      %20 = vector.shape_cast %19 : vector<64xf32> to vector<1x64xf32>
      %21 = arith.mulf %18, %18 : vector<16x64xf32>
      %cst_16 = arith.constant dense<0.000000e+00> : vector<64xf32>
      %22 = vector.multi_reduction <add>, %21, %cst_16 [0] : vector<16x64xf32> to vector<64xf32>
      %23 = vector.shape_cast %22 : vector<64xf32> to vector<1x64xf32>
      %c0_17 = arith.constant 0 : index
      %c0_18 = arith.constant 0 : index
      %c0_19 = arith.constant 0 : index
      %24 = vector.load %arg6[%c0_17, %c0_18, %c0_19] : memref<1x2x64xf32, #tpu.memory_space<vmem>>, vector<1x2x64xf32>
      %25 = tpu.concatenate %20, %23 in 0 : vector<1x64xf32>, vector<1x64xf32> -> vector<2x64xf32>
      %26 = vector.shape_cast %25 : vector<2x64xf32> to vector<1x2x64xf32>
      %27 = arith.addf %24, %26 : vector<1x2x64xf32>
      %c0_20 = arith.constant 0 : index
      %c0_21 = arith.constant 0 : index
      %c0_22 = arith.constant 0 : index
      %28 = vector.load %arg6[%c0_20, %c0_21, %c0_22] : memref<1x2x64xf32, #tpu.memory_space<vmem>>, vector<1x2x64xf32>
      tpu.vector_store %arg6[%c0_20, %c0_21, %c0_22], %27 {strides = array<i32>} : memref<1x2x64xf32, #tpu.memory_space<vmem>>, vector<1x2x64xf32>,
    } else {
    }
    return
  }
  func.func @transform_0(%arg0: i32, %arg1: i32, %arg2: i32, %arg3: i32) -> (i32, i32) {
    %c1_i32 = arith.constant 1 : i32
    %0 = arith.muli %arg0, %c1_i32 : i32
    %1 = arith.addi %0, %arg2 : i32
    %c0_i32 = arith.constant 0 : i32
    %2 = arith.minsi %1, %c0_i32 : i32
    %c0_i32_0 = arith.constant 0 : i32
    return %2, %arg3 : i32, i32
  }
  func.func @transform_1(%arg0: i32, %arg1: i32, %arg2: i32, %arg3: i32) -> (i32, i32) {
    %c0_i32 = arith.constant 0 : i32
    return %arg3, %arg1 : i32, i32
  }
  func.func @transform_2(%arg0: i32, %arg1: i32, %arg2: i32, %arg3: i32) -> (i32, i32, i32) {
    %c0_i32 = arith.constant 0 : i32
    %c0_i32_0 = arith.constant 0 : i32
    return %arg0, %c0_i32, %arg1 : i32, i32, i32
  }
}

</mosaic_0001>

<llo_original>
// kernel: tpu_custom_call.1
$region0: #{tpu_custom_call.1}
  #allocation0 [shape = 'u32[]', space=smem, size = 0x4, offset = 0x4, fixed_abs, tag = 'smem constant byte address 0x4 - core index']
  #allocation1 [shape = 'u32[144,128]{1,0:T(1,128)}', space=vmem, size = 0x12000, scoped, tag = 'internal scratch']
  #allocation2 [shape = 'f32[16,64]{1,0:T(8,128)}', space=vmem, size = 0x2000, scoped, tag = 'scratch operand']
  %s0 = inlined_call_operand.hbm [shape: f32[16,32], index: 0, kind: input, shape index: {}]
  %s1 = inlined_call_operand.hbm [shape: bf16[32,64], index: 1, kind: input, shape index: {}]
  %s2 = inlined_call_operand.hbm [shape: f32[1,2,64], index: 2, kind: output, shape index: {}]
  %s3 = sld [smem:[#allocation0]]
  $region38: #{tpu_custom_call.1} parent=0
    _
  %s5 = ssub.s32 1, %s3
  %s6 = scalar_select 0, %s5, %s3
  $region1: #{tpu_custom_call.1} parent=0
    #allocation3 [shape = 'u8[8192]{0}', space=vmem, size = 0x2000, scoped, tag = 'input window, operand 0, single buffered']
    #allocation4 [shape = 's32[1]{0}', space=sflag, size = 0x4, scoped, tag = 'scoped memory for tpu_custom_call.1']
    #allocation5 [shape = 's32[1]{0}', space=sflag, size = 0x4, scoped, tag = 'scoped memory for tpu_custom_call.1']
    #allocation6 [shape = 'u8[8192]{0}', space=vmem, size = 0x2000, scoped, tag = 'input window, operand 1, single buffered']
    #allocation7 [shape = 's32[1]{0}', space=sflag, size = 0x4, scoped, tag = 'scoped memory for tpu_custom_call.1']
    #allocation8 [shape = 'u8[1024]{0}', space=vmem, size = 0x400, scoped, tag = 'output window, operand 0, single buffered']
    %7 = vsyncpa [#allocation4], 0
    %8 = vsyncpa [#allocation7], 0
    %9 = vsyncpa [#allocation5], 0
    // Predicated region
    $region2: #{tpu_custom_call.1} parent=1 // pred_check
      _
    $region3: #{tpu_custom_call.1} parent=1 // pred_check_branch
      %11 = sbr.rel (0) target = $region5
    $region4: #{tpu_custom_call.1} parent=1 // pred_region
      %s12 = sadd.s32 0, 0
      %p13 = scmp.lt.s32.totalorder %s12, 0
      %s14 = scalar_select %p13, %s12, 0
      %s15 = smul.u32 2, %s14
      %s17 = ssub.s32 256, 256
      %18 = vsyncadd [#allocation4], %s17
      %s19 = smul.addr %s15, 128
      %s20 = scalar_lea.hbm %s0, %s19
      %s21 = sshll.u32 [#allocation3], 4
      %s22 = int_to_ptr.vmem [resolvable:$true] %s21
      %27 = dma.hbm_to_vmem [thread:$0]  %s20, 256, %s22, [#allocation4], 128, 128, 8
    $region5: #{tpu_custom_call.1} parent=1 // pred_fallthru
      _
    // Predicated region
    $region6: #{tpu_custom_call.1} parent=1 // pred_check
      _
    $region7: #{tpu_custom_call.1} parent=1 // pred_check_branch
      %29 = sbr.rel (0) target = $region9
    $region8: #{tpu_custom_call.1} parent=1 // pred_region
      %s31 = ssub.s32 256, 256
      %32 = vsyncadd [#allocation7], %s31
      %s33 = sshll.u32 [#allocation6], 4
      %s34 = int_to_ptr.vmem [resolvable:$true] %s33
      %39 = dma.hbm_to_vmem [thread:$0]  %s1, 256, %s34, [#allocation7], 64, 64, 4
    $region9: #{tpu_custom_call.1} parent=1 // pred_fallthru
      _
    // Predicated region
    $region10: #{tpu_custom_call.1} parent=1 // pred_check
      _
    $region11: #{tpu_custom_call.1} parent=1 // pred_check_branch
      %41 = sbr.rel (0) target = $region13
    $region12: #{tpu_custom_call.1} parent=1 // pred_region
      %42 = dma.done [#allocation4], 256
    $region13: #{tpu_custom_call.1} parent=1 // pred_fallthru
      _
    // Predicated region
    $region14: #{tpu_custom_call.1} parent=1 // pred_check
      _
    $region15: #{tpu_custom_call.1} parent=1 // pred_check_branch
      %44 = sbr.rel (0) target = $region17
    $region16: #{tpu_custom_call.1} parent=1 // pred_region
      %45 = dma.done [#allocation7], 256
    $region17: #{tpu_custom_call.1} parent=1 // pred_fallthru
      _
    %s46 = sadd.s32 0, 0
    %p47 = scmp.lt.s32.totalorder %s46, 0
    %s48 = scalar_select %p47, %s46, 0
    %s49 = smul.u32 2, %s48
    %p51 = scmp.eq.s32.totalorder 0, 0
    %p52 = scmp.eq.s32.totalorder 0, 0
    %p53 = pnand %p51, %p52
    %p54 = pneg %p53
    // Predicated region
    $region18: #{tpu_custom_call.1} parent=1 // pred_check
      _
    $region19: #{tpu_custom_call.1} parent=1 // pred_check_branch
      %56 = sbr.rel (%p53) target = $region21
    $region20: #{tpu_custom_call.1} parent=1 // pred_region
      %vm57 = vcmask 517120
      %58 = vst.msk [vmem:[#allocation8] sm:$0x3] %vm57, 0.0
    $region21: #{tpu_custom_call.1} parent=1 // pred_fallthru
      _
    // Predicated region
    $region22: #{tpu_custom_call.1} parent=1 // pred_check
      %p59 = pneg %p52
    $region23: #{tpu_custom_call.1} parent=1 // pred_check_branch
      %61 = sbr.rel (%p59) target = $region25
    $region24: #{tpu_custom_call.1} parent=1 // pred_region
      %vm62 = vcmask 523264
      %63 = vst.msk [vmem:[#allocation2] sm:$0xff] %vm62, 0.0
      %64 = vst.msk [vmem:[#allocation2 + $0x8] sm:$0xff] %vm62, 0.0
    $region25: #{tpu_custom_call.1} parent=1 // pred_fallthru
      _
    %v65 = vld [vmem:[#allocation2] sm:$0xff]
    %v66 = vld [vmem:[#allocation2 + $0x8] sm:$0xff]
    %v67 = vld [vmem:[#allocation3] sm:$0xff]
    %v68 = vld [vmem:[#allocation3 + $0x8] sm:$0xff]
    %v69 = vpack.c.bf16 %v68, %v67
    %v70 = vld [vmem:[#allocation6] sm:$0xf]
    %v71 = vld [vmem:[#allocation6 + $0x4] sm:$0xf]
    %v72 = vld [vmem:[#allocation6 + $0x8] sm:$0xf]
    %v73 = vld [vmem:[#allocation6 + $0xc] sm:$0xf]
    %v78 = vunpack.c.l.b16 %v70
    %v79 = vunpack.c.l.b16 %v71
    %v80 = vunpack.c.l.b16 %v72
    %v81 = vunpack.c.l.b16 %v73
    %v82 = vpack.c.b16 %v79, %v78
    %v83 = vpack.c.b16 %v81, %v80
    %vm86 = vcmask 261120
    %v88 = vsel %vm86, %v69, 0
    %90 = vmatprep.subr.bf16.mxu0 0
    %91 = vmatpush1.bf16.msra.mxu0 %v82
    %92 = vmatprep.subr.bf16.mxu0 0
    %93 = vmatpush1.bf16.msra.mxu0 %v83
    %94 = vmatprep.subr.bf16.mxu0 0
    %95 = vmatpush1.bf16.msra.mxu0 0
    %96 = vmatprep.subr.bf16.mxu0 0
    %97 = vmatpush1.bf16.msra.mxu0 0
    %98 = vmatprep.subr.bf16.mxu0 0
    %99 = vmatpush1.bf16.msra.mxu0 0
    %100 = vmatprep.subr.bf16.mxu0 0
    %101 = vmatpush1.bf16.msra.mxu0 0
    %102 = vmatprep.subr.bf16.mxu0 0
    %103 = vmatpush1.bf16.msra.mxu0 0
    %104 = vmatprep.subr.bf16.mxu0 0
    %105 = vmatpush1.bf16.msra.mxu0 0
    %106 = vmatprep.subr.bf16.mxu0 0
    %107 = vmatpush1.bf16.msra.mxu0 0
    %108 = vmatprep.subr.bf16.mxu0 0
    %109 = vmatpush1.bf16.msra.mxu0 0
    %110 = vmatprep.subr.bf16.mxu0 0
    %111 = vmatpush1.bf16.msra.mxu0 0
    %112 = vmatprep.subr.bf16.mxu0 0
    %113 = vmatpush1.bf16.msra.mxu0 0
    %114 = vmatprep.subr.bf16.mxu0 0
    %115 = vmatpush1.bf16.msra.mxu0 0
    %116 = vmatprep.subr.bf16.mxu0 0
    %117 = vmatpush1.bf16.msra.mxu0 0
    %118 = vmatprep.subr.bf16.mxu0 0
    %119 = vmatpush1.bf16.msra.mxu0 0
    %120 = vmatprep.subr.bf16.mxu0 0
    %121 = vmatpush1.bf16.msra.mxu0 0
    %122 = vmatprep.mubr.bf16.mxu0 0
    %123 = vmatmul.mubr.bf16.gmra.mrb[0].mxu0 %v88
    %v124 = vpop.f32.mrb[0].mxu0
    %v125 = vadd.f32 0.0, %v124
    %v126 = vpop.f32.mrb[0].mxu0
    %v127 = vpop.f32.mrb[0].mxu0
    %v128 = vadd.f32 0.0, %v127
    %v129 = vpop.f32.mrb[0].mxu0
    %130 = vdwg.mxu0
    %v131 = vadd.f32 %v65, %v125
    %v132 = vadd.f32 %v66, %v128
    %vm133 = vcmask 523264
    %134 = vst.msk [vmem:[#allocation2] sm:$0xff] %vm133, %v131
    %135 = vst.msk [vmem:[#allocation2 + $0x8] sm:$0xff] %vm133, %v132
    // Predicated region
    $region26: #{tpu_custom_call.1} parent=1 // pred_check
      %p136 = pneg %p52
    $region27: #{tpu_custom_call.1} parent=1 // pred_check_branch
      %138 = sbr.rel (%p136) target = $region29
    $region28: #{tpu_custom_call.1} parent=1 // pred_region
      %v139 = vld [vmem:[#allocation2] sm:$0xff]
      %v140 = vld [vmem:[#allocation2 + $0x8] sm:$0xff]
      %v141 = vsel %vm133, %v139, 0.0
      %v142 = vsel %vm133, %v140, 0.0
      %v143 = vadd.f32 %v141, %v142
      %v144 = vrot.slane %v143, 4
      %v145 = vadd.f32 %v143, %v144
      %v146 = vrot.slane %v145, 2
      %v147 = vadd.f32 %v145, %v146
      %v148 = vrot.slane %v147, 1
      %v149 = vadd.f32 %v147, %v148
      %v150 = vmul.f32 %v139, %v139
      %v151 = vmul.f32 %v140, %v140
      %v152 = vsel %vm133, %v150, 0.0
      %v153 = vsel %vm133, %v151, 0.0
      %v154 = vadd.f32 %v152, %v153
      %v155 = vrot.slane %v154, 4
      %v156 = vadd.f32 %v154, %v155
      %v157 = vrot.slane %v156, 2
      %v158 = vadd.f32 %v156, %v157
      %v159 = vrot.slane %v158, 1
      %v160 = vadd.f32 %v158, %v159
      %v161 = vld [vmem:[#allocation8] sm:$0x3]
      %vm162 = vcmask 1040384
      %v163 = vsel %vm162, %v149, %v160
      %v164 = vadd.f32 %v161, %v163
      %vm165 = vcmask 517120
      %166 = vst.msk [vmem:[#allocation8] sm:$0x3] %vm165, %v164
    $region29: #{tpu_custom_call.1} parent=1 // pred_fallthru
      _
    // Predicated region
    $region30: #{tpu_custom_call.1} parent=1 // pred_check
      _
    $region31: #{tpu_custom_call.1} parent=1 // pred_check_branch
      %168 = sbr.rel (0) target = $region33
    $region32: #{tpu_custom_call.1} parent=1 // pred_region
      %s170 = ssub.s32 32, 32
      %171 = vsyncadd [#allocation5], %s170
      %s173 = sshll.u32 [#allocation8], 4
      %s174 = int_to_ptr.vmem [resolvable:$true] %s173
      %176 = dma.vmem_to_hbm [thread:$0]  %s174, 32, %s2, [#allocation5]
    $region33: #{tpu_custom_call.1} parent=1 // pred_fallthru
      _
    // Predicated region
    $region34: #{tpu_custom_call.1} parent=1 // pred_check
      _
    $region35: #{tpu_custom_call.1} parent=1 // pred_check_branch
      %178 = sbr.rel (0) target = $region37
    $region36: #{tpu_custom_call.1} parent=1 // pred_region
      %179 = dma.done [#allocation5], 32
    $region37: #{tpu_custom_call.1} parent=1 // pred_fallthru
      _
    %180 = vsyncpa [#allocation4], 1
    %181 = vsyncpa [#allocation7], 1
    %182 = vsyncpa [#allocation5], 1

</llo_original>
